<compile_context>
chip_gen: v7x
topology: tpu7x:2x2x1
jax: 0.10.0
libtpu: 0.0.40
codegen_flags: <defaults>
</compile_context>

<pallas_src>
import functools

import numpy as np
import jax
import jax.numpy as jnp
from jax.experimental import pallas as pl
from jax.experimental.pallas import tpu as pltpu

# Shapes implied by the PyTorch module:
#   Linear(52, 1) after Flatten(Conv1d(1,4,k=4)(len=NUM_EDGE)) -> 4*(NUM_EDGE-3)=52 -> NUM_EDGE=16
#   Linear(6, hidden): 6 = 1 (dense1) + 1 (dense2) + 4 (taskandfrac) -> TF_DIM=4
NUM_EDGE = 16
KSIZE = 4
CONV_OUT = 4
CONV_LEN = NUM_EDGE - KSIZE + 1      # 13
CONV_FLAT = CONV_OUT * CONV_LEN      # 52
TF_DIM = 4
STATE_DIM = 2 * NUM_EDGE + TF_DIM    # 36
HIDDEN = 32
NUM_ACTIONS = 8

# ---- packed parameter slab layout (rows x 128 lanes, all offsets 8-aligned) ----
SLAB_COLS = 128
R_WC = 0      # fused conv weights  [32, 128]  (cols 0:52 conv1, 52:104 conv2, rest 0)
R_BC = 32     # fused conv bias     [1, 128]
R_WD = 40     # fused dense1/2 W    [128, 2]   (rows 0:52 -> col 0, 52:104 -> col 1)
R_BD = 168    # fused dense1/2 b    [1, 2]
R_W1A = 176   # linear1 W rows for [x1,x2]     [2, HIDDEN]
R_W1B = 184   # linear1 W rows for taskandfrac [4, HIDDEN]
R_B1 = 192    # linear1 b           [1, HIDDEN]
R_W2 = 200    # linear2 W           [HIDDEN, HIDDEN]
R_B2 = 232    # linear2 b           [1, HIDDEN]
R_W3 = 240    # linear3 W           [HIDDEN, HIDDEN]
R_B3 = 272    # linear3 b           [1, HIDDEN]
R_WO = 280    # output W            [HIDDEN, NUM_ACTIONS]
R_BO = 312    # output b            [1, NUM_ACTIONS]
SLAB_ROWS = 320


def policy_kernel(state_ref, p_ref, out_ref):
    state = state_ref[...]                               # [Tb, 36]
    s32 = state[:, :2 * NUM_EDGE]                        # [Tb, 32]  (remain | hop)
    tf = state[:, 2 * NUM_EDGE:]                         # [Tb, 4]

    # fused conv1/conv2 (block-diag im2col matmul) + ReLU   -> [Tb, 128]
    # (cols 104:128 of the weight/bias are zero, so those lanes stay 0 after relu)
    wc = p_ref[R_WC:R_WC + 2 * NUM_EDGE, :]              # [32, 128]
    bc = p_ref[R_BC:R_BC + 1, :]                         # [1, 128]
    h = jnp.maximum(
        jnp.dot(s32, wc, preferred_element_type=jnp.float32) + bc, 0.0)

    # fused dense1/dense2 (52->1 each, block-diag) + tanh    -> [Tb, 2]
    wd = p_ref[R_WD:R_WD + SLAB_COLS, 0:2]               # [128, 2] (rows 104:128 zero)
    bd = p_ref[R_BD:R_BD + 1, 0:2]                       # [1, 2]
    x12 = jnp.tanh(jnp.dot(h, wd, preferred_element_type=jnp.float32) + bd)

    # linear1: cat([x1, x2, taskandfrac]) @ W1 + b1, split into two MXU dots
    w1a = p_ref[R_W1A:R_W1A + 2, 0:HIDDEN]               # [2, H]
    w1b = p_ref[R_W1B:R_W1B + TF_DIM, 0:HIDDEN]          # [4, H]
    b1 = p_ref[R_B1:R_B1 + 1, 0:HIDDEN]                  # [1, H]
    x = jnp.tanh(jnp.dot(x12, w1a, preferred_element_type=jnp.float32)
                 + jnp.dot(tf, w1b, preferred_element_type=jnp.float32)
                 + b1)

    w2 = p_ref[R_W2:R_W2 + HIDDEN, 0:HIDDEN]
    b2 = p_ref[R_B2:R_B2 + 1, 0:HIDDEN]
    x = jnp.tanh(jnp.dot(x, w2, preferred_element_type=jnp.float32) + b2)

    w3 = p_ref[R_W3:R_W3 + HIDDEN, 0:HIDDEN]
    b3 = p_ref[R_B3:R_B3 + 1, 0:HIDDEN]
    x = jnp.tanh(jnp.dot(x, w3, preferred_element_type=jnp.float32) + b3)

    wo = p_ref[R_WO:R_WO + HIDDEN, 0:NUM_ACTIONS]
    bo = p_ref[R_BO:R_BO + 1, 0:NUM_ACTIONS]
    logits = jnp.dot(x, wo, preferred_element_type=jnp.float32) + bo

    m = jnp.max(logits, axis=-1, keepdims=True)
    e = jnp.exp(logits - m)
    out_ref[...] = e * pl.reciprocal(jnp.sum(e, axis=-1, keepdims=True), approx=True)


@jax.jit
def policy_forward(state, param_slab):
    B = state.shape[0]
    tile_b = B if B <= 512 else 512                      # batch tile (512 rows << VMEM on all gens)
    grid = (pl.cdiv(B, tile_b),)
    return pl.pallas_call(
        policy_kernel,
        out_shape=jax.ShapeDtypeStruct((B, NUM_ACTIONS), jnp.float32),
        grid=grid,
        in_specs=[
            pl.BlockSpec((tile_b, STATE_DIM), lambda i: (i, 0)),
            pl.BlockSpec((SLAB_ROWS, SLAB_COLS), lambda i: (0, 0)),  # weights resident
        ],
        out_specs=pl.BlockSpec((tile_b, NUM_ACTIONS), lambda i: (i, 0)),
        compiler_params=pltpu.CompilerParams(
            dimension_semantics=("parallel",)),          # lights up 2nd TC on v7x
    )(state, param_slab)


# ----------------------------- parameter setup ---------------------------------

def conv1d_as_matmul(w, b):
    """Fold Conv1d(in=1, out=4, k=4) + Flatten into x @ M + bias (numpy, setup-time).

    Flatten index = c*CONV_LEN + t, matching PyTorch's [B, C, T] -> [B, C*T].
    """
    w = np.asarray(w, np.float32)
    b = np.asarray(b, np.float32)
    M = np.zeros((NUM_EDGE, CONV_FLAT), np.float32)
    for c in range(CONV_OUT):
        for t in range(CONV_LEN):
            M[t:t + KSIZE, c * CONV_LEN + t] = w[c, 0, :]
    bias = np.tile(b[:, None], (1, CONV_LEN)).reshape(1, CONV_FLAT)
    return M, bias


def pack_params(raw):
    """Pack all 16 parameter tensors into a single [320, 128] f32 VMEM slab."""
    (c1w, c1b, c2w, c2b, wd1, bd1, wd2, bd2,
     w1, b1, w2, b2, w3, b3, wo, bo) = [np.asarray(p, np.float32) for p in raw]
    mc1, bc1 = conv1d_as_matmul(c1w, c1b)
    mc2, bc2 = conv1d_as_matmul(c2w, c2b)

    slab = np.zeros((SLAB_ROWS, SLAB_COLS), np.float32)
    # fused block-diagonal conv weight/bias
    slab[R_WC:R_WC + NUM_EDGE, 0:CONV_FLAT] = mc1
    slab[R_WC + NUM_EDGE:R_WC + 2 * NUM_EDGE, CONV_FLAT:2 * CONV_FLAT] = mc2
    slab[R_BC, 0:CONV_FLAT] = bc1[0]
    slab[R_BC, CONV_FLAT:2 * CONV_FLAT] = bc2[0]
    # fused block-diagonal dense1/dense2
    slab[R_WD:R_WD + CONV_FLAT, 0] = wd1[:, 0]
    slab[R_WD + CONV_FLAT:R_WD + 2 * CONV_FLAT, 1] = wd2[:, 0]
    slab[R_BD, 0] = bd1[0, 0]
    slab[R_BD, 1] = bd2[0, 0]
    # MLP head
    slab[R_W1A:R_W1A + 2, 0:HIDDEN] = w1[0:2, :]
    slab[R_W1B:R_W1B + TF_DIM, 0:HIDDEN] = w1[2:, :]
    slab[R_B1, 0:HIDDEN] = b1[0]
    slab[R_W2:R_W2 + HIDDEN, 0:HIDDEN] = w2
    slab[R_B2, 0:HIDDEN] = b2[0]
    slab[R_W3:R_W3 + HIDDEN, 0:HIDDEN] = w3
    slab[R_B3, 0:HIDDEN] = b3[0]
    slab[R_WO:R_WO + HIDDEN, 0:NUM_ACTIONS] = wo
    slab[R_BO, 0:NUM_ACTIONS] = bo[0]
    return jnp.asarray(slab)


def init_raw_params(key):
    ks = jax.random.split(key, 16)
    s = 0.1
    conv1_w = s * jax.random.normal(ks[0], (CONV_OUT, 1, KSIZE), jnp.float32)
    conv1_b = s * jax.random.normal(ks[1], (CONV_OUT,), jnp.float32)
    conv2_w = s * jax.random.normal(ks[2], (CONV_OUT, 1, KSIZE), jnp.float32)
    conv2_b = s * jax.random.normal(ks[3], (CONV_OUT,), jnp.float32)
    wd1 = s * jax.random.normal(ks[4], (CONV_FLAT, 1), jnp.float32)
    bd1 = s * jax.random.normal(ks[5], (1, 1), jnp.float32)
    wd2 = s * jax.random.normal(ks[6], (CONV_FLAT, 1), jnp.float32)
    bd2 = s * jax.random.normal(ks[7], (1, 1), jnp.float32)
    w1 = s * jax.random.normal(ks[8], (6, HIDDEN), jnp.float32)
    b1 = s * jax.random.normal(ks[9], (1, HIDDEN), jnp.float32)
    w2 = s * jax.random.normal(ks[10], (HIDDEN, HIDDEN), jnp.float32)
    b2 = s * jax.random.normal(ks[11], (1, HIDDEN), jnp.float32)
    w3 = s * jax.random.normal(ks[12], (HIDDEN, HIDDEN), jnp.float32)
    b3 = s * jax.random.normal(ks[13], (1, HIDDEN), jnp.float32)
    wo = 0.003 * jax.random.uniform(ks[14], (HIDDEN, NUM_ACTIONS), jnp.float32,
                                    minval=-1.0, maxval=1.0)
    bo = 0.003 * jax.random.uniform(ks[15], (1, NUM_ACTIONS), jnp.float32,
                                    minval=-1.0, maxval=1.0)
    return (conv1_w, conv1_b, conv2_w, conv2_b, wd1, bd1, wd2, bd2,
            w1, b1, w2, b2, w3, b3, wo, bo)


def reference_forward(state, raw):
    """Pure-JAX reference matching the PyTorch forward exactly."""
    (c1w, c1b, c2w, c2b, wd1, bd1, wd2, bd2,
     w1, b1, w2, b2, w3, b3, wo, bo) = raw
    remain = state[:, :NUM_EDGE]
    hop = state[:, NUM_EDGE:2 * NUM_EDGE]
    tf = state[:, 2 * NUM_EDGE:]

    def conv(x, w, b):
        cols = jnp.stack([x[:, t:t + KSIZE] for t in range(CONV_LEN)], axis=1)  # [B,13,4]
        y = jnp.einsum('btk,ck->bct', cols, w[:, 0, :]) + b[None, :, None]      # [B,4,13]
        return jax.nn.relu(y).reshape(x.shape[0], CONV_FLAT)

    h1 = conv(remain, c1w, c1b)
    h2 = conv(hop, c2w, c2b)
    x1 = jnp.tanh(h1 @ wd1 + bd1)
    x2 = jnp.tanh(h2 @ wd2 + bd2)
    x = jnp.concatenate([x1, x2, tf], axis=1)
    x = jnp.tanh(x @ w1 + b1)
    x = jnp.tanh(x @ w2 + b2)
    x = jnp.tanh(x @ w3 + b3)
    return jax.nn.softmax(x @ wo + bo, axis=-1)


if __name__ == "__main__":
    key = jax.random.PRNGKey(0)
    k_state, k_big, k_params = jax.random.split(key, 3)

    raw = init_raw_params(k_params)
    slab = pack_params(raw)

    # small batch (per-step inference shape)
    B = 8
    state = jax.random.uniform(k_state, (B, STATE_DIM), jnp.float32)
    probs = jax.block_until_ready(policy_forward(state, slab))

    assert probs.shape == (B, NUM_ACTIONS)
    assert bool(jnp.all(jnp.isfinite(probs)))
    # approx reciprocal -> relaxed sum-to-one tolerance
    assert bool(jnp.all(jnp.abs(jnp.sum(probs, axis=-1) - 1.0) < 2e-3))
    ref = reference_forward(state, raw)
    assert bool(jnp.all(jnp.abs(probs - ref) < 2e-3))

    # larger batch exercising the batch grid (tile_b=512, 2 tiles, parallel axis)
    Bb = 1024
    state_big = jax.random.uniform(k_big, (Bb, STATE_DIM), jnp.float32)
    probs_big = jax.block_until_ready(policy_forward(state_big, slab))
    ref_big = reference_forward(state_big, raw)
    assert probs_big.shape == (Bb, NUM_ACTIONS)
    assert bool(jnp.all(jnp.abs(probs_big - ref_big) < 2e-3))

    print("KERNEL_OK")
</pallas_src>

<mosaic_0001>
module attributes {stable_mosaic.version = 11 : i64} {
  func.func @policy_kernel(%arg0: i32, %arg1: memref<8x36xf32, #tpu.memory_space<vmem>>, %arg2: memref<320x128xf32, #tpu.memory_space<vmem>>, %arg3: memref<8x8xf32, #tpu.memory_space<vmem>>) attributes {dimension_semantics = [#tpu.dimension_semantics<parallel>], iteration_bounds = array<i64: 1>, scalar_prefetch = 0 : i64, scratch_operands = 0 : i64, tpu.core_type = #tpu.core_type<tc>, window_params = [{transform_indices = @transform_0, window_bounds = array<i64: 8, 36>}, {pipeline_mode = #tpu.pipeline_mode<synchronous>, transform_indices = @transform_1, window_bounds = array<i64: 320, 128>}, {transform_indices = @transform_2, window_bounds = array<i64: 8, 8>}]} {
    %c0 = arith.constant 0 : index
    %c0_0 = arith.constant 0 : index
    %0 = vector.load %arg1[%c0, %c0_0] : memref<8x36xf32, #tpu.memory_space<vmem>>, vector<8x36xf32>
    %1 = vector.extract_strided_slice %0 {offsets = [0, 0], sizes = [8, 32], strides = [1, 1]} : vector<8x36xf32> to vector<8x32xf32>
    %2 = vector.extract_strided_slice %0 {offsets = [0, 32], sizes = [8, 4], strides = [1, 1]} : vector<8x36xf32> to vector<8x4xf32>
    %c0_1 = arith.constant 0 : index
    %c0_2 = arith.constant 0 : index
    %3 = vector.load %arg2[%c0_1, %c0_2] : memref<320x128xf32, #tpu.memory_space<vmem>>, vector<32x128xf32>
    %c32 = arith.constant 32 : index
    %c0_3 = arith.constant 0 : index
    %4 = vector.load %arg2[%c32, %c0_3] : memref<320x128xf32, #tpu.memory_space<vmem>>, vector<1x128xf32>
    %cst = arith.constant dense<0.000000e+00> : vector<8x128xf32>
    %5 = tpu.matmul %1, %3, %cst {dimension_numbers = #tpu.dot_dimension_numbers<[1], [0], [0], [1], [0, 0, 1, 1], [], []>} : vector<8x32xf32>, vector<32x128xf32>, vector<8x128xf32> -> vector<8x128xf32>
    %6 = vector.broadcast %4 : vector<1x128xf32> to vector<8x128xf32>
    %7 = arith.addf %5, %6 : vector<8x128xf32>
    %cst_4 = arith.constant 0.000000e+00 : f32
    %8 = vector.broadcast %cst_4 : f32 to vector<8x128xf32>
    %9 = arith.maximumf %7, %8 : vector<8x128xf32>
    %c40 = arith.constant 40 : index
    %c0_5 = arith.constant 0 : index
    %10 = vector.load %arg2[%c40, %c0_5] : memref<320x128xf32, #tpu.memory_space<vmem>>, vector<128x2xf32>
    %c168 = arith.constant 168 : index
    %c0_6 = arith.constant 0 : index
    %11 = vector.load %arg2[%c168, %c0_6] : memref<320x128xf32, #tpu.memory_space<vmem>>, vector<1x2xf32>
    %cst_7 = arith.constant dense<0.000000e+00> : vector<8x2xf32>
    %12 = tpu.matmul %9, %10, %cst_7 {dimension_numbers = #tpu.dot_dimension_numbers<[1], [0], [0], [1], [0, 0, 1, 1], [], []>} : vector<8x128xf32>, vector<128x2xf32>, vector<8x2xf32> -> vector<8x2xf32>
    %13 = vector.broadcast %11 : vector<1x2xf32> to vector<8x2xf32>
    %14 = arith.addf %12, %13 : vector<8x2xf32>
    %15 = math.tanh %14 : vector<8x2xf32>
    %c176 = arith.constant 176 : index
    %c0_8 = arith.constant 0 : index
    %16 = vector.load %arg2[%c176, %c0_8] : memref<320x128xf32, #tpu.memory_space<vmem>>, vector<2x32xf32>
    %c184 = arith.constant 184 : index
    %c0_9 = arith.constant 0 : index
    %17 = vector.load %arg2[%c184, %c0_9] : memref<320x128xf32, #tpu.memory_space<vmem>>, vector<4x32xf32>
    %c192 = arith.constant 192 : index
    %c0_10 = arith.constant 0 : index
    %18 = vector.load %arg2[%c192, %c0_10] : memref<320x128xf32, #tpu.memory_space<vmem>>, vector<1x32xf32>
    %cst_11 = arith.constant dense<0.000000e+00> : vector<8x32xf32>
    %19 = tpu.matmul %15, %16, %cst_11 {dimension_numbers = #tpu.dot_dimension_numbers<[1], [0], [0], [1], [0, 0, 1, 1], [], []>} : vector<8x2xf32>, vector<2x32xf32>, vector<8x32xf32> -> vector<8x32xf32>
    %cst_12 = arith.constant dense<0.000000e+00> : vector<8x32xf32>
    %20 = tpu.matmul %2, %17, %cst_12 {dimension_numbers = #tpu.dot_dimension_numbers<[1], [0], [0], [1], [0, 0, 1, 1], [], []>} : vector<8x4xf32>, vector<4x32xf32>, vector<8x32xf32> -> vector<8x32xf32>
    %21 = arith.addf %19, %20 : vector<8x32xf32>
    %22 = vector.broadcast %18 : vector<1x32xf32> to vector<8x32xf32>
    %23 = arith.addf %21, %22 : vector<8x32xf32>
    %24 = math.tanh %23 : vector<8x32xf32>
    %c200 = arith.constant 200 : index
    %c0_13 = arith.constant 0 : index
    %25 = vector.load %arg2[%c200, %c0_13] : memref<320x128xf32, #tpu.memory_space<vmem>>, vector<32x32xf32>
    %c232 = arith.constant 232 : index
    %c0_14 = arith.constant 0 : index
    %26 = vector.load %arg2[%c232, %c0_14] : memref<320x128xf32, #tpu.memory_space<vmem>>, vector<1x32xf32>
    %cst_15 = arith.constant dense<0.000000e+00> : vector<8x32xf32>
    %27 = tpu.matmul %24, %25, %cst_15 {dimension_numbers = #tpu.dot_dimension_numbers<[1], [0], [0], [1], [0, 0, 1, 1], [], []>} : vector<8x32xf32>, vector<32x32xf32>, vector<8x32xf32> -> vector<8x32xf32>
    %28 = vector.broadcast %26 : vector<1x32xf32> to vector<8x32xf32>
    %29 = arith.addf %27, %28 : vector<8x32xf32>
    %30 = math.tanh %29 : vector<8x32xf32>
    %c240 = arith.constant 240 : index
    %c0_16 = arith.constant 0 : index
    %31 = vector.load %arg2[%c240, %c0_16] : memref<320x128xf32, #tpu.memory_space<vmem>>, vector<32x32xf32>
    %c272 = arith.constant 272 : index
    %c0_17 = arith.constant 0 : index
    %32 = vector.load %arg2[%c272, %c0_17] : memref<320x128xf32, #tpu.memory_space<vmem>>, vector<1x32xf32>
    %cst_18 = arith.constant dense<0.000000e+00> : vector<8x32xf32>
    %33 = tpu.matmul %30, %31, %cst_18 {dimension_numbers = #tpu.dot_dimension_numbers<[1], [0], [0], [1], [0, 0, 1, 1], [], []>} : vector<8x32xf32>, vector<32x32xf32>, vector<8x32xf32> -> vector<8x32xf32>
    %34 = vector.broadcast %32 : vector<1x32xf32> to vector<8x32xf32>
    %35 = arith.addf %33, %34 : vector<8x32xf32>
    %36 = math.tanh %35 : vector<8x32xf32>
    %c280 = arith.constant 280 : index
    %c0_19 = arith.constant 0 : index
    %37 = vector.load %arg2[%c280, %c0_19] : memref<320x128xf32, #tpu.memory_space<vmem>>, vector<32x8xf32>
    %c312 = arith.constant 312 : index
    %c0_20 = arith.constant 0 : index
    %38 = vector.load %arg2[%c312, %c0_20] : memref<320x128xf32, #tpu.memory_space<vmem>>, vector<1x8xf32>
    %cst_21 = arith.constant dense<0.000000e+00> : vector<8x8xf32>
    %39 = tpu.matmul %36, %37, %cst_21 {dimension_numbers = #tpu.dot_dimension_numbers<[1], [0], [0], [1], [0, 0, 1, 1], [], []>} : vector<8x32xf32>, vector<32x8xf32>, vector<8x8xf32> -> vector<8x8xf32>
    %40 = vector.broadcast %38 : vector<1x8xf32> to vector<8x8xf32>
    %41 = arith.addf %39, %40 : vector<8x8xf32>
    %cst_22 = arith.constant dense<0xFF800000> : vector<8xf32>
    %42 = vector.multi_reduction <maximumf>, %41, %cst_22 [1] : vector<8x8xf32> to vector<8xf32>
    %43 = vector.shape_cast %42 : vector<8xf32> to vector<8x1xf32>
    %44 = vector.broadcast %43 : vector<8x1xf32> to vector<8x8xf32>
    %45 = arith.subf %41, %44 : vector<8x8xf32>
    %46 = math.exp %45 : vector<8x8xf32>
    %cst_23 = arith.constant dense<0.000000e+00> : vector<8xf32>
    %47 = vector.multi_reduction <add>, %46, %cst_23 [1] : vector<8x8xf32> to vector<8xf32>
    %48 = vector.shape_cast %47 : vector<8xf32> to vector<8x1xf32>
    %49 = tpu.reciprocal %48 {approx = true} : vector<8x1xf32> -> vector<8x1xf32>
    %50 = vector.broadcast %49 : vector<8x1xf32> to vector<8x8xf32>
    %51 = arith.mulf %46, %50 : vector<8x8xf32>
    %c0_24 = arith.constant 0 : index
    %c0_25 = arith.constant 0 : index
    %52 = vector.load %arg3[%c0_24, %c0_25] : memref<8x8xf32, #tpu.memory_space<vmem>>, vector<8x8xf32>
    tpu.vector_store %arg3[%c0_24, %c0_25], %51 {strides = array<i32>} : memref<8x8xf32, #tpu.memory_space<vmem>>, vector<8x8xf32>,
    return
  }
  func.func @transform_0(%arg0: i32) -> (i32, i32) {
    %c0_i32 = arith.constant 0 : i32
    %c0_i32_0 = arith.constant 0 : i32
    return %arg0, %c0_i32 : i32, i32
  }
  func.func @transform_1(%arg0: i32) -> (i32, i32) {
    %c0_i32 = arith.constant 0 : i32
    %c0_i32_0 = arith.constant 0 : i32
    %c0_i32_1 = arith.constant 0 : i32
    return %c0_i32, %c0_i32_0 : i32, i32
  }
  func.func @transform_2(%arg0: i32) -> (i32, i32) {
    %c0_i32 = arith.constant 0 : i32
    %c0_i32_0 = arith.constant 0 : i32
    return %arg0, %c0_i32 : i32, i32
  }
}

</mosaic_0001>

<llo_original>
// kernel: policy_forward.1
$region0: #{policy_forward.1}
  #allocation0 [shape = 'u32[]', space=smem, size = 0x4, offset = 0x4, fixed_abs, tag = 'smem constant byte address 0x4 - core index']
  #allocation1 [shape = 'u32[144,128]{1,0:T(1,128)}', space=vmem, size = 0x12000, scoped, tag = 'internal scratch']
  %s0 = inlined_call_operand.hbm [shape: f32[8,36], index: 0, kind: input, shape index: {}]
  %s1 = inlined_call_operand.hbm [shape: f32[320,128], index: 1, kind: input, shape index: {}]
  %s2 = inlined_call_operand.hbm [shape: f32[8,8], index: 2, kind: output, shape index: {}]
  %s3 = sld [smem:[#allocation0]]
  $region26: #{policy_forward.1} parent=0
    _
  %s5 = ssub.s32 1, %s3
  %s6 = scalar_select 0, %s5, %s3
  $region1: #{policy_forward.1} parent=0
    #allocation2 [shape = 'u8[4096]{0}', space=vmem, size = 0x1000, scoped, tag = 'input window, operand 0, single buffered']
    #allocation3 [shape = 's32[1]{0}', space=sflag, size = 0x4, scoped, tag = 'scoped memory for policy_forward.1']
    #allocation4 [shape = 's32[1]{0}', space=sflag, size = 0x4, scoped, tag = 'scoped memory for policy_forward.1']
    #allocation5 [shape = 'u8[163840]{0}', space=vmem, size = 0x28000, scoped, tag = 'input window, operand 1, single buffered']
    #allocation6 [shape = 's32[1]{0}', space=sflag, size = 0x4, scoped, tag = 'scoped memory for policy_forward.1']
    #allocation7 [shape = 'u8[4096]{0}', space=vmem, size = 0x1000, scoped, tag = 'output window, operand 0, single buffered']
    %7 = vsyncpa [#allocation3], 0
    %8 = vsyncpa [#allocation6], 0
    %9 = vsyncpa [#allocation4], 0
    // Predicated region
    $region2: #{policy_forward.1} parent=1 // pred_check
      _
    $region3: #{policy_forward.1} parent=1 // pred_check_branch
      %11 = sbr.rel (0) target = $region5
    $region4: #{policy_forward.1} parent=1 // pred_region
      %s13 = ssub.s32 128, 128
      %14 = vsyncadd [#allocation3], %s13
      %s16 = sshll.u32 [#allocation2], 4
      %s17 = int_to_ptr.vmem [resolvable:$true] %s16
      %19 = dma.hbm_to_vmem [thread:$0]  %s0, 128, %s17, [#allocation3]
    $region5: #{policy_forward.1} parent=1 // pred_fallthru
      _
    // Predicated region
    $region6: #{policy_forward.1} parent=1 // pred_check
      _
    $region7: #{policy_forward.1} parent=1 // pred_check_branch
      %21 = sbr.rel (0) target = $region9
    $region8: #{policy_forward.1} parent=1 // pred_region
      %s23 = ssub.s32 5120, 5120
      %24 = vsyncadd [#allocation6], %s23
      %s25 = sshll.u32 [#allocation5], 4
      %s26 = int_to_ptr.vmem [resolvable:$true] %s25
      %31 = dma.hbm_to_vmem [thread:$0]  %s1, 5120, %s26, [#allocation6], 128, 128, 8
    $region9: #{policy_forward.1} parent=1 // pred_fallthru
      _
    // Predicated region
    $region10: #{policy_forward.1} parent=1 // pred_check
      _
    $region11: #{policy_forward.1} parent=1 // pred_check_branch
      %33 = sbr.rel (0) target = $region13
    $region12: #{policy_forward.1} parent=1 // pred_region
      %34 = dma.done [#allocation3], 128
    $region13: #{policy_forward.1} parent=1 // pred_fallthru
      _
    // Predicated region
    $region14: #{policy_forward.1} parent=1 // pred_check
      _
    $region15: #{policy_forward.1} parent=1 // pred_check_branch
      %36 = sbr.rel (0) target = $region17
    $region16: #{policy_forward.1} parent=1 // pred_region
      %37 = dma.done [#allocation6], 5120
    $region17: #{policy_forward.1} parent=1 // pred_fallthru
      _
    %v38 = vld [vmem:[#allocation2] sm:$0xff]
    %v39 = vld [vmem:[#allocation5] sm:$0xff]
    %v40 = vld [vmem:[#allocation5 + $0x8] sm:$0xff]
    %v41 = vld [vmem:[#allocation5 + $0x10] sm:$0xff]
    %v42 = vld [vmem:[#allocation5 + $0x18] sm:$0xff]
    %v43 = vld [vmem:[#allocation5 + $0x20] sm:$0x1]
    %v44 = vlaneseq
    %v45 = vshrl.u32 %v44, 7
    %v46 = vsub.s32 0, %v45
    %v47 = vrot.slane %v43, %v46
    %vm48 = vcmask 261120
    %v50 = vsel %vm48, %v38, 0
    %52 = vmatprep.subr.mxu0 0.0
    %53 = vmatpush1.msra.mxu0 %v39
    %54 = vmatprep.subr.mxu0 0.0
    %55 = vmatpush1.msra.mxu0 %v40
    %56 = vmatprep.subr.mxu0 0.0
    %57 = vmatpush1.msra.mxu0 %v41
    %58 = vmatprep.subr.mxu0 0.0
    %59 = vmatpush1.msra.mxu0 %v42
    %60 = vmatprep.subr.mxu0 0.0
    %61 = vmatpush1.msra.mxu0 0.0
    %62 = vmatprep.subr.mxu0 0.0
    %63 = vmatpush1.msra.mxu0 0.0
    %64 = vmatprep.subr.mxu0 0.0
    %65 = vmatpush1.msra.mxu0 0.0
    %66 = vmatprep.subr.mxu0 0.0
    %67 = vmatpush1.msra.mxu0 0.0
    %68 = vmatprep.subr.mxu0 0.0
    %69 = vmatpush1.msra.mxu0 0.0
    %70 = vmatprep.subr.mxu0 0.0
    %71 = vmatpush1.msra.mxu0 0.0
    %72 = vmatprep.subr.mxu0 0.0
    %73 = vmatpush1.msra.mxu0 0.0
    %74 = vmatprep.subr.mxu0 0.0
    %75 = vmatpush1.msra.mxu0 0.0
    %76 = vmatprep.subr.mxu0 0.0
    %77 = vmatpush1.msra.mxu0 0.0
    %78 = vmatprep.subr.mxu0 0.0
    %79 = vmatpush1.msra.mxu0 0.0
    %80 = vmatprep.subr.mxu0 0.0
    %81 = vmatpush1.msra.mxu0 0.0
    %82 = vmatprep.subr.mxu0 0.0
    %83 = vmatpush1.msra.mxu0 0.0
    %84 = vmatprep.subr.mxu0 0.0
    %85 = vmatpush1.msra.mxu0 0.0
    %86 = vmatprep.subr.mxu0 0.0
    %87 = vmatpush1.msra.mxu0 0.0
    %88 = vmatprep.subr.mxu0 0.0
    %89 = vmatpush1.msra.mxu0 0.0
    %90 = vmatprep.subr.mxu0 0.0
    %91 = vmatpush1.msra.mxu0 0.0
    %92 = vmatprep.subr.mxu0 0.0
    %93 = vmatpush1.msra.mxu0 0.0
    %94 = vmatprep.subr.mxu0 0.0
    %95 = vmatpush1.msra.mxu0 0.0
    %96 = vmatprep.subr.mxu0 0.0
    %97 = vmatpush1.msra.mxu0 0.0
    %98 = vmatprep.subr.mxu0 0.0
    %99 = vmatpush1.msra.mxu0 0.0
    %100 = vmatprep.subr.mxu0 0.0
    %101 = vmatpush1.msra.mxu0 0.0
    %102 = vmatprep.subr.mxu0 0.0
    %103 = vmatpush1.msra.mxu0 0.0
    %104 = vmatprep.subr.mxu0 0.0
    %105 = vmatpush1.msra.mxu0 0.0
    %106 = vmatprep.subr.mxu0 0.0
    %107 = vmatpush1.msra.mxu0 0.0
    %108 = vmatprep.subr.mxu0 0.0
    %109 = vmatpush1.msra.mxu0 0.0
    %110 = vmatprep.subr.mxu0 0.0
    %111 = vmatpush1.msra.mxu0 0.0
    %112 = vmatprep.subr.mxu0 0.0
    %113 = vmatpush1.msra.mxu0 0.0
    %114 = vmatprep.subr.mxu0 0.0
    %115 = vmatpush1.msra.mxu0 0.0
    %116 = vmatprep.mubr.f32.mxu0 0.0
    %117 = vmatmul.mubr.f32.gmra.mrb[0].mxu0 %v50
    %v118 = vpop.f32.mrb[0].mxu0
    %v119 = vadd.f32 %v47, %v118
    %v120 = vpop.f32.mrb[0].mxu0
    %121 = vdwg.mxu0
    %v122 = vmax.f32 %v119, 0.0
    %v123 = vld [vmem:[#allocation5 + $0x28] sm:$0xff]
    %v124 = vld [vmem:[#allocation5 + $0x30] sm:$0xff]
    %v125 = vld [vmem:[#allocation5 + $0x38] sm:$0xff]
    %v126 = vld [vmem:[#allocation5 + $0x40] sm:$0xff]
    %v127 = vld [vmem:[#allocation5 + $0x48] sm:$0xff]
    %v128 = vld [vmem:[#allocation5 + $0x50] sm:$0xff]
    %v129 = vld [vmem:[#allocation5 + $0x58] sm:$0xff]
    %v130 = vld [vmem:[#allocation5 + $0x60] sm:$0xff]
    %v131 = vld [vmem:[#allocation5 + $0x68] sm:$0xff]
    %v132 = vld [vmem:[#allocation5 + $0x70] sm:$0xff]
    %v133 = vld [vmem:[#allocation5 + $0x78] sm:$0xff]
    %v134 = vld [vmem:[#allocation5 + $0x80] sm:$0xff]
    %v135 = vld [vmem:[#allocation5 + $0x88] sm:$0xff]
    %v136 = vld [vmem:[#allocation5 + $0x90] sm:$0xff]
    %v137 = vld [vmem:[#allocation5 + $0x98] sm:$0xff]
    %v138 = vld [vmem:[#allocation5 + $0xa0] sm:$0xff]
    %v139 = vld [vmem:[#allocation5 + $0xa8] sm:$0x1]
    %v140 = vlaneseq
    %v141 = vshrl.u32 %v140, 7
    %v142 = vsub.s32 0, %v141
    %v143 = vrot.slane %v139, %v142
    %144 = vmatprep.subr.mxu0 0.0
    %145 = vmatpush1.msra.mxu0 %v123
    %146 = vmatprep.subr.mxu0 0.0
    %147 = vmatpush1.msra.mxu0 %v124
    %148 = vmatprep.subr.mxu0 0.0
    %149 = vmatpush1.msra.mxu0 %v125
    %150 = vmatprep.subr.mxu0 0.0
    %151 = vmatpush1.msra.mxu0 %v126
    %152 = vmatprep.subr.mxu0 0.0
    %153 = vmatpush1.msra.mxu0 %v127
    %154 = vmatprep.subr.mxu0 0.0
    %155 = vmatpush1.msra.mxu0 %v128
    %156 = vmatprep.subr.mxu0 0.0
    %157 = vmatpush1.msra.mxu0 %v129
    %158 = vmatprep.subr.mxu0 0.0
    %159 = vmatpush1.msra.mxu0 %v130
    %160 = vmatprep.subr.mxu0 0.0
    %161 = vmatpush1.msra.mxu0 %v131
    %162 = vmatprep.subr.mxu0 0.0
    %163 = vmatpush1.msra.mxu0 %v132
    %164 = vmatprep.subr.mxu0 0.0
    %165 = vmatpush1.msra.mxu0 %v133
    %166 = vmatprep.subr.mxu0 0.0
    %167 = vmatpush1.msra.mxu0 %v134
    %168 = vmatprep.subr.mxu0 0.0
    %169 = vmatpush1.msra.mxu0 %v135
    %170 = vmatprep.subr.mxu0 0.0
    %171 = vmatpush1.msra.mxu0 %v136
    %172 = vmatprep.subr.mxu0 0.0
    %173 = vmatpush1.msra.mxu0 %v137
    %174 = vmatprep.subr.mxu0 0.0
    %175 = vmatpush1.msra.mxu0 %v138
    %176 = vmatprep.subr.mxu0 0.0
    %177 = vmatpush1.msra.mxu0 0.0
    %178 = vmatprep.subr.mxu0 0.0
    %179 = vmatpush1.msra.mxu0 0.0
    %180 = vmatprep.subr.mxu0 0.0
    %181 = vmatpush1.msra.mxu0 0.0
    %182 = vmatprep.subr.mxu0 0.0
    %183 = vmatpush1.msra.mxu0 0.0
    %184 = vmatprep.subr.mxu0 0.0
    %185 = vmatpush1.msra.mxu0 0.0
    %186 = vmatprep.subr.mxu0 0.0
    %187 = vmatpush1.msra.mxu0 0.0
    %188 = vmatprep.subr.mxu0 0.0
    %189 = vmatpush1.msra.mxu0 0.0
    %190 = vmatprep.subr.mxu0 0.0
    %191 = vmatpush1.msra.mxu0 0.0
    %192 = vmatprep.subr.mxu0 0.0
    %193 = vmatpush1.msra.mxu0 0.0
    %194 = vmatprep.subr.mxu0 0.0
    %195 = vmatpush1.msra.mxu0 0.0
    %196 = vmatprep.subr.mxu0 0.0
    %197 = vmatpush1.msra.mxu0 0.0
    %198 = vmatprep.subr.mxu0 0.0
    %199 = vmatpush1.msra.mxu0 0.0
    %200 = vmatprep.subr.mxu0 0.0
    %201 = vmatpush1.msra.mxu0 0.0
    %202 = vmatprep.subr.mxu0 0.0
    %203 = vmatpush1.msra.mxu0 0.0
    %204 = vmatprep.subr.mxu0 0.0
    %205 = vmatpush1.msra.mxu0 0.0
    %206 = vmatprep.subr.mxu0 0.0
    %207 = vmatpush1.msra.mxu0 0.0
    %208 = vmatprep.mubr.f32.mxu0 0.0
    %209 = vmatmul.mubr.f32.gmra.mrb[0].mxu0 %v122
    %v210 = vpop.f32.mrb[0].mxu0
    %v211 = vadd.f32 %v143, %v210
    %v212 = vpop.f32.mrb[0].mxu0
    %213 = vdwg.mxu0
    %v214 = vtanh.pop %v211
    %v215 = vld [vmem:[#allocation5 + $0xb0] sm:$0x3]
    %v216 = vld [vmem:[#allocation5 + $0xb8] sm:$0xf]
    %v217 = vld [vmem:[#allocation5 + $0xc0] sm:$0x1]
    %218 = vrot.lane.b32.xlu0 %v38, 96
    %v219 = vpop.permute.xlu0 %218
    %vm220 = vcmask 31744
    %v221 = vsel %vm220, %v219, 0
    %vm223 = vcmask 1043456
    %v225 = vsel %vm223, %v216, 0
    %227 = vmatprep.subr.mxu0 0.0
    %228 = vmatpush1.msra.mxu0 %v225
    %229 = vmatprep.subr.mxu0 0.0
    %230 = vmatpush1.msra.mxu0 0.0
    %231 = vmatprep.subr.mxu0 0.0
    %232 = vmatpush1.msra.mxu0 0.0
    %233 = vmatprep.subr.mxu0 0.0
    %234 = vmatpush1.msra.mxu0 0.0
    %235 = vmatprep.subr.mxu0 0.0
    %236 = vmatpush1.msra.mxu0 0.0
    %237 = vmatprep.subr.mxu0 0.0
    %238 = vmatpush1.msra.mxu0 0.0
    %239 = vmatprep.subr.mxu0 0.0
    %240 = vmatpush1.msra.mxu0 0.0
    %241 = vmatprep.subr.mxu0 0.0
    %242 = vmatpush1.msra.mxu0 0.0
    %243 = vmatprep.subr.mxu0 0.0
    %244 = vmatpush1.msra.mxu0 0.0
    %245 = vmatprep.subr.mxu0 0.0
    %246 = vmatpush1.msra.mxu0 0.0
    %247 = vmatprep.subr.mxu0 0.0
    %248 = vmatpush1.msra.mxu0 0.0
    %249 = vmatprep.subr.mxu0 0.0
    %250 = vmatpush1.msra.mxu0 0.0
    %251 = vmatprep.subr.mxu0 0.0
    %252 = vmatpush1.msra.mxu0 0.0
    %253 = vmatprep.subr.mxu0 0.0
    %254 = vmatpush1.msra.mxu0 0.0
    %255 = vmatprep.subr.mxu0 0.0
    %256 = vmatpush1.msra.mxu0 0.0
    %257 = vmatprep.subr.mxu0 0.0
    %258 = vmatpush1.msra.mxu0 0.0
    %259 = vmatprep.subr.mxu0 0.0
    %260 = vmatpush1.msra.mxu0 0.0
    %261 = vmatprep.subr.mxu0 0.0
    %262 = vmatpush1.msra.mxu0 0.0
    %263 = vmatprep.subr.mxu0 0.0
    %264 = vmatpush1.msra.mxu0 0.0
    %265 = vmatprep.subr.mxu0 0.0
    %266 = vmatpush1.msra.mxu0 0.0
    %267 = vmatprep.subr.mxu0 0.0
    %268 = vmatpush1.msra.mxu0 0.0
    %269 = vmatprep.subr.mxu0 0.0
    %270 = vmatpush1.msra.mxu0 0.0
    %271 = vmatprep.subr.mxu0 0.0
    %272 = vmatpush1.msra.mxu0 0.0
    %273 = vmatprep.subr.mxu0 0.0
    %274 = vmatpush1.msra.mxu0 0.0
    %275 = vmatprep.subr.mxu0 0.0
    %276 = vmatpush1.msra.mxu0 0.0
    %277 = vmatprep.subr.mxu0 0.0
    %278 = vmatpush1.msra.mxu0 0.0
    %279 = vmatprep.subr.mxu0 0.0
    %280 = vmatpush1.msra.mxu0 0.0
    %281 = vmatprep.subr.mxu0 0.0
    %282 = vmatpush1.msra.mxu0 0.0
    %283 = vmatprep.subr.mxu0 0.0
    %284 = vmatpush1.msra.mxu0 0.0
    %285 = vmatprep.subr.mxu0 0.0
    %286 = vmatpush1.msra.mxu0 0.0
    %287 = vmatprep.subr.mxu0 0.0
    %288 = vmatpush1.msra.mxu0 0.0
    %289 = vmatprep.subr.mxu0 0.0
    %290 = vmatpush1.msra.mxu0 0.0
    %291 = vmatprep.mubr.f32.mxu0 0.0
    %292 = vmatmul.mubr.f32.gmra.mrb[0].mxu0 %v221
    %v293 = vpop.f32.mrb[0].mxu0
    %v294 = vadd.f32 0.0, %v293
    %v295 = vpop.f32.mrb[0].mxu0
    %296 = vdwg.mxu0
    %vm297 = vcmask 15360
    %v299 = vsel %vm297, %v214, 0
    %vm301 = vcmask 1041408
    %v303 = vsel %vm301, %v215, 0
    %305 = vmatprep.subr.mxu0 0.0
    %306 = vmatpush1.msra.mxu0 %v303
    %307 = vmatprep.subr.mxu0 0.0
    %308 = vmatpush1.msra.mxu0 0.0
    %309 = vmatprep.subr.mxu0 0.0
    %310 = vmatpush1.msra.mxu0 0.0
    %311 = vmatprep.subr.mxu0 0.0
    %312 = vmatpush1.msra.mxu0 0.0
    %313 = vmatprep.subr.mxu0 0.0
    %314 = vmatpush1.msra.mxu0 0.0
    %315 = vmatprep.subr.mxu0 0.0
    %316 = vmatpush1.msra.mxu0 0.0
    %317 = vmatprep.subr.mxu0 0.0
    %318 = vmatpush1.msra.mxu0 0.0
    %319 = vmatprep.subr.mxu0 0.0
    %320 = vmatpush1.msra.mxu0 0.0
    %321 = vmatprep.subr.mxu0 0.0
    %322 = vmatpush1.msra.mxu0 0.0
    %323 = vmatprep.subr.mxu0 0.0
    %324 = vmatpush1.msra.mxu0 0.0
    %325 = vmatprep.subr.mxu0 0.0
    %326 = vmatpush1.msra.mxu0 0.0
    %327 = vmatprep.subr.mxu0 0.0
    %328 = vmatpush1.msra.mxu0 0.0
    %329 = vmatprep.subr.mxu0 0.0
    %330 = vmatpush1.msra.mxu0 0.0
    %331 = vmatprep.subr.mxu0 0.0
    %332 = vmatpush1.msra.mxu0 0.0
    %333 = vmatprep.subr.mxu0 0.0
    %334 = vmatpush1.msra.mxu0 0.0
    %335 = vmatprep.subr.mxu0 0.0
    %336 = vmatpush1.msra.mxu0 0.0
    %337 = vmatprep.subr.mxu0 0.0
    %338 = vmatpush1.msra.mxu0 0.0
    %339 = vmatprep.subr.mxu0 0.0
    %340 = vmatpush1.msra.mxu0 0.0
    %341 = vmatprep.subr.mxu0 0.0
    %342 = vmatpush1.msra.mxu0 0.0
    %343 = vmatprep.subr.mxu0 0.0
    %344 = vmatpush1.msra.mxu0 0.0
    %345 = vmatprep.subr.mxu0 0.0
    %346 = vmatpush1.msra.mxu0 0.0
    %347 = vmatprep.subr.mxu0 0.0
    %348 = vmatpush1.msra.mxu0 0.0
    %349 = vmatprep.subr.mxu0 0.0
    %350 = vmatpush1.msra.mxu0 0.0
    %351 = vmatprep.subr.mxu0 0.0
    %352 = vmatpush1.msra.mxu0 0.0
    %353 = vmatprep.subr.mxu0 0.0
    %354 = vmatpush1.msra.mxu0 0.0
    %355 = vmatprep.subr.mxu0 0.0
    %356 = vmatpush1.msra.mxu0 0.0
    %357 = vmatprep.subr.mxu0 0.0
    %358 = vmatpush1.msra.mxu0 0.0
    %359 = vmatprep.subr.mxu0 0.0
    %360 = vmatpush1.msra.mxu0 0.0
    %361 = vmatprep.subr.mxu0 0.0
    %362 = vmatpush1.msra.mxu0 0.0
    %363 = vmatprep.subr.mxu0 0.0
    %364 = vmatpush1.msra.mxu0 0.0
    %365 = vmatprep.subr.mxu0 0.0
    %366 = vmatpush1.msra.mxu0 0.0
    %367 = vmatprep.subr.mxu0 0.0
    %368 = vmatpush1.msra.mxu0 0.0
    %369 = vmatprep.mubr.f32.mxu0 0.0
    %370 = vmatmul.mubr.f32.gmra.mrb[0].mxu0 %v299
    %v371 = vpop.f32.mrb[0].mxu0
    %v372 = vadd.f32 %v294, %v371
    %v373 = vpop.f32.mrb[0].mxu0
    %374 = vdwg.mxu0
    %v375 = vlaneseq
    %v376 = vshrl.u32 %v375, 7
    %v377 = vsub.s32 0, %v376
    %v378 = vrot.slane %v217, %v377
    %v379 = vadd.f32 %v372, %v378
    %v380 = vtanh.pop %v379
    %v381 = vld [vmem:[#allocation5 + $0xc8] sm:$0xff]
    %v382 = vld [vmem:[#allocation5 + $0xd0] sm:$0xff]
    %v383 = vld [vmem:[#allocation5 + $0xd8] sm:$0xff]
    %v384 = vld [vmem:[#allocation5 + $0xe0] sm:$0xff]
    %v385 = vld [vmem:[#allocation5 + $0xe8] sm:$0x1]
    %v386 = vlaneseq
    %v387 = vshrl.u32 %v386, 7
    %v388 = vsub.s32 0, %v387
    %v389 = vrot.slane %v385, %v388
    %v391 = vsel %vm48, %v380, 0
    %393 = vmatprep.subr.mxu0 0.0
    %394 = vmatpush1.msra.mxu0 %v381
    %395 = vmatprep.subr.mxu0 0.0
    %396 = vmatpush1.msra.mxu0 %v382
    %397 = vmatprep.subr.mxu0 0.0
    %398 = vmatpush1.msra.mxu0 %v383
    %399 = vmatprep.subr.mxu0 0.0
    %400 = vmatpush1.msra.mxu0 %v384
    %401 = vmatprep.subr.mxu0 0.0
    %402 = vmatpush1.msra.mxu0 0.0
    %403 = vmatprep.subr.mxu0 0.0
    %404 = vmatpush1.msra.mxu0 0.0
    %405 = vmatprep.subr.mxu0 0.0
    %406 = vmatpush1.msra.mxu0 0.0
    %407 = vmatprep.subr.mxu0 0.0
    %408 = vmatpush1.msra.mxu0 0.0
    %409 = vmatprep.subr.mxu0 0.0
    %410 = vmatpush1.msra.mxu0 0.0
    %411 = vmatprep.subr.mxu0 0.0
    %412 = vmatpush1.msra.mxu0 0.0
    %413 = vmatprep.subr.mxu0 0.0
    %414 = vmatpush1.msra.mxu0 0.0
    %415 = vmatprep.subr.mxu0 0.0
    %416 = vmatpush1.msra.mxu0 0.0
    %417 = vmatprep.subr.mxu0 0.0
    %418 = vmatpush1.msra.mxu0 0.0
    %419 = vmatprep.subr.mxu0 0.0
    %420 = vmatpush1.msra.mxu0 0.0
    %421 = vmatprep.subr.mxu0 0.0
    %422 = vmatpush1.msra.mxu0 0.0
    %423 = vmatprep.subr.mxu0 0.0
    %424 = vmatpush1.msra.mxu0 0.0
    %425 = vmatprep.subr.mxu0 0.0
    %426 = vmatpush1.msra.mxu0 0.0
    %427 = vmatprep.subr.mxu0 0.0
    %428 = vmatpush1.msra.mxu0 0.0
    %429 = vmatprep.subr.mxu0 0.0
    %430 = vmatpush1.msra.mxu0 0.0
    %431 = vmatprep.subr.mxu0 0.0
    %432 = vmatpush1.msra.mxu0 0.0
    %433 = vmatprep.subr.mxu0 0.0
    %434 = vmatpush1.msra.mxu0 0.0
    %435 = vmatprep.subr.mxu0 0.0
    %436 = vmatpush1.msra.mxu0 0.0
    %437 = vmatprep.subr.mxu0 0.0
    %438 = vmatpush1.msra.mxu0 0.0
    %439 = vmatprep.subr.mxu0 0.0
    %440 = vmatpush1.msra.mxu0 0.0
    %441 = vmatprep.subr.mxu0 0.0
    %442 = vmatpush1.msra.mxu0 0.0
    %443 = vmatprep.subr.mxu0 0.0
    %444 = vmatpush1.msra.mxu0 0.0
    %445 = vmatprep.subr.mxu0 0.0
    %446 = vmatpush1.msra.mxu0 0.0
    %447 = vmatprep.subr.mxu0 0.0
    %448 = vmatpush1.msra.mxu0 0.0
    %449 = vmatprep.subr.mxu0 0.0
    %450 = vmatpush1.msra.mxu0 0.0
    %451 = vmatprep.subr.mxu0 0.0
    %452 = vmatpush1.msra.mxu0 0.0
    %453 = vmatprep.subr.mxu0 0.0
    %454 = vmatpush1.msra.mxu0 0.0
    %455 = vmatprep.subr.mxu0 0.0
    %456 = vmatpush1.msra.mxu0 0.0
    %457 = vmatprep.mubr.f32.mxu0 0.0
    %458 = vmatmul.mubr.f32.gmra.mrb[0].mxu0 %v391
    %v459 = vpop.f32.mrb[0].mxu0
    %v460 = vadd.f32 %v389, %v459
    %v461 = vpop.f32.mrb[0].mxu0
    %462 = vdwg.mxu0
    %v463 = vtanh.pop %v460
    %v464 = vld [vmem:[#allocation5 + $0xf0] sm:$0xff]
    %v465 = vld [vmem:[#allocation5 + $0xf8] sm:$0xff]
    %v466 = vld [vmem:[#allocation5 + $0x100] sm:$0xff]
    %v467 = vld [vmem:[#allocation5 + $0x108] sm:$0xff]
    %v468 = vld [vmem:[#allocation5 + $0x110] sm:$0x1]
    %v469 = vlaneseq
    %v470 = vshrl.u32 %v469, 7
    %v471 = vsub.s32 0, %v470
    %v472 = vrot.slane %v468, %v471
    %v474 = vsel %vm48, %v463, 0
    %476 = vmatprep.subr.mxu0 0.0
    %477 = vmatpush1.msra.mxu0 %v464
    %478 = vmatprep.subr.mxu0 0.0
    %479 = vmatpush1.msra.mxu0 %v465
    %480 = vmatprep.subr.mxu0 0.0
    %481 = vmatpush1.msra.mxu0 %v466
    %482 = vmatprep.subr.mxu0 0.0
    %483 = vmatpush1.msra.mxu0 %v467
    %484 = vmatprep.subr.mxu0 0.0
    %485 = vmatpush1.msra.mxu0 0.0
    %486 = vmatprep.subr.mxu0 0.0
    %487 = vmatpush1.msra.mxu0 0.0
    %488 = vmatprep.subr.mxu0 0.0
    %489 = vmatpush1.msra.mxu0 0.0
    %490 = vmatprep.subr.mxu0 0.0
    %491 = vmatpush1.msra.mxu0 0.0
    %492 = vmatprep.subr.mxu0 0.0
    %493 = vmatpush1.msra.mxu0 0.0
    %494 = vmatprep.subr.mxu0 0.0
    %495 = vmatpush1.msra.mxu0 0.0
    %496 = vmatprep.subr.mxu0 0.0
    %497 = vmatpush1.msra.mxu0 0.0
    %498 = vmatprep.subr.mxu0 0.0
    %499 = vmatpush1.msra.mxu0 0.0
    %500 = vmatprep.subr.mxu0 0.0
    %501 = vmatpush1.msra.mxu0 0.0
    %502 = vmatprep.subr.mxu0 0.0
    %503 = vmatpush1.msra.mxu0 0.0
    %504 = vmatprep.subr.mxu0 0.0
    %505 = vmatpush1.msra.mxu0 0.0
    %506 = vmatprep.subr.mxu0 0.0
    %507 = vmatpush1.msra.mxu0 0.0
    %508 = vmatprep.subr.mxu0 0.0
    %509 = vmatpush1.msra.mxu0 0.0
    %510 = vmatprep.subr.mxu0 0.0
    %511 = vmatpush1.msra.mxu0 0.0
    %512 = vmatprep.subr.mxu0 0.0
    %513 = vmatpush1.msra.mxu0 0.0
    %514 = vmatprep.subr.mxu0 0.0
    %515 = vmatpush1.msra.mxu0 0.0
    %516 = vmatprep.subr.mxu0 0.0
    %517 = vmatpush1.msra.mxu0 0.0
    %518 = vmatprep.subr.mxu0 0.0
    %519 = vmatpush1.msra.mxu0 0.0
    %520 = vmatprep.subr.mxu0 0.0
    %521 = vmatpush1.msra.mxu0 0.0
    %522 = vmatprep.subr.mxu0 0.0
    %523 = vmatpush1.msra.mxu0 0.0
    %524 = vmatprep.subr.mxu0 0.0
    %525 = vmatpush1.msra.mxu0 0.0
    %526 = vmatprep.subr.mxu0 0.0
    %527 = vmatpush1.msra.mxu0 0.0
    %528 = vmatprep.subr.mxu0 0.0
    %529 = vmatpush1.msra.mxu0 0.0
    %530 = vmatprep.subr.mxu0 0.0
    %531 = vmatpush1.msra.mxu0 0.0
    %532 = vmatprep.subr.mxu0 0.0
    %533 = vmatpush1.msra.mxu0 0.0
    %534 = vmatprep.subr.mxu0 0.0
    %535 = vmatpush1.msra.mxu0 0.0
    %536 = vmatprep.subr.mxu0 0.0
    %537 = vmatpush1.msra.mxu0 0.0
    %538 = vmatprep.subr.mxu0 0.0
    %539 = vmatpush1.msra.mxu0 0.0
    %540 = vmatprep.mubr.f32.mxu0 0.0
    %541 = vmatmul.mubr.f32.gmra.mrb[0].mxu0 %v474
    %v542 = vpop.f32.mrb[0].mxu0
    %v543 = vadd.f32 %v472, %v542
    %v544 = vpop.f32.mrb[0].mxu0
    %545 = vdwg.mxu0
    %v546 = vtanh.pop %v543
    %v547 = vld [vmem:[#allocation5 + $0x118] sm:$0xff]
    %v548 = vld [vmem:[#allocation5 + $0x120] sm:$0xff]
    %v549 = vld [vmem:[#allocation5 + $0x128] sm:$0xff]
    %v550 = vld [vmem:[#allocation5 + $0x130] sm:$0xff]
    %v551 = vld [vmem:[#allocation5 + $0x138] sm:$0x1]
    %v552 = vlaneseq
    %v553 = vshrl.u32 %v552, 7
    %v554 = vsub.s32 0, %v553
    %v555 = vrot.slane %v551, %v554
    %v557 = vsel %vm48, %v546, 0
    %559 = vmatprep.subr.mxu0 0.0
    %560 = vmatpush1.msra.mxu0 %v547
    %561 = vmatprep.subr.mxu0 0.0
    %562 = vmatpush1.msra.mxu0 %v548
    %563 = vmatprep.subr.mxu0 0.0
    %564 = vmatpush1.msra.mxu0 %v549
    %565 = vmatprep.subr.mxu0 0.0
    %566 = vmatpush1.msra.mxu0 %v550
    %567 = vmatprep.subr.mxu0 0.0
    %568 = vmatpush1.msra.mxu0 0.0
    %569 = vmatprep.subr.mxu0 0.0
    %570 = vmatpush1.msra.mxu0 0.0
    %571 = vmatprep.subr.mxu0 0.0
    %572 = vmatpush1.msra.mxu0 0.0
    %573 = vmatprep.subr.mxu0 0.0
    %574 = vmatpush1.msra.mxu0 0.0
    %575 = vmatprep.subr.mxu0 0.0
    %576 = vmatpush1.msra.mxu0 0.0
    %577 = vmatprep.subr.mxu0 0.0
    %578 = vmatpush1.msra.mxu0 0.0
    %579 = vmatprep.subr.mxu0 0.0
    %580 = vmatpush1.msra.mxu0 0.0
    %581 = vmatprep.subr.mxu0 0.0
    %582 = vmatpush1.msra.mxu0 0.0
    %583 = vmatprep.subr.mxu0 0.0
    %584 = vmatpush1.msra.mxu0 0.0
    %585 = vmatprep.subr.mxu0 0.0
    %586 = vmatpush1.msra.mxu0 0.0
    %587 = vmatprep.subr.mxu0 0.0
    %588 = vmatpush1.msra.mxu0 0.0
    %589 = vmatprep.subr.mxu0 0.0
    %590 = vmatpush1.msra.mxu0 0.0
    %591 = vmatprep.subr.mxu0 0.0
    %592 = vmatpush1.msra.mxu0 0.0
    %593 = vmatprep.subr.mxu0 0.0
    %594 = vmatpush1.msra.mxu0 0.0
    %595 = vmatprep.subr.mxu0 0.0
    %596 = vmatpush1.msra.mxu0 0.0
    %597 = vmatprep.subr.mxu0 0.0
    %598 = vmatpush1.msra.mxu0 0.0
    %599 = vmatprep.subr.mxu0 0.0
    %600 = vmatpush1.msra.mxu0 0.0
    %601 = vmatprep.subr.mxu0 0.0
    %602 = vmatpush1.msra.mxu0 0.0
    %603 = vmatprep.subr.mxu0 0.0
    %604 = vmatpush1.msra.mxu0 0.0
    %605 = vmatprep.subr.mxu0 0.0
    %606 = vmatpush1.msra.mxu0 0.0
    %607 = vmatprep.subr.mxu0 0.0
    %608 = vmatpush1.msra.mxu0 0.0
    %609 = vmatprep.subr.mxu0 0.0
    %610 = vmatpush1.msra.mxu0 0.0
    %611 = vmatprep.subr.mxu0 0.0
    %612 = vmatpush1.msra.mxu0 0.0
    %613 = vmatprep.subr.mxu0 0.0
    %614 = vmatpush1.msra.mxu0 0.0
    %615 = vmatprep.subr.mxu0 0.0
    %616 = vmatpush1.msra.mxu0 0.0
    %617 = vmatprep.subr.mxu0 0.0
    %618 = vmatpush1.msra.mxu0 0.0
    %619 = vmatprep.subr.mxu0 0.0
    %620 = vmatpush1.msra.mxu0 0.0
    %621 = vmatprep.subr.mxu0 0.0
    %622 = vmatpush1.msra.mxu0 0.0
    %623 = vmatprep.mubr.f32.mxu0 0.0
    %624 = vmatmul.mubr.f32.gmra.mrb[0].mxu0 %v557
    %v625 = vpop.f32.mrb[0].mxu0
    %v626 = vadd.f32 %v555, %v625
    %v627 = vpop.f32.mrb[0].mxu0
    %628 = vdwg.mxu0
    %vm629 = vcmask 64512
    %v630 = vsel %vm629, %v626, -inf
    %631 = vmax.xlane.f32.xlu0 %v630
    %v632 = vpop.xlane.xlu0 %631
    %v633 = vsub.f32 %v626, %v632
    %v634 = vmul.f32 %v633, 1.442695
    %v635 = vpow.pop %v634
    %v636 = vsel %vm629, %v635, 0.0
    %637 = vadd.xlane.f32.xlu0 %v636
    %v638 = vpop.xlane.xlu0 %637
    %v639 = vrcp.pop %v638
    %v640 = vmul.f32 %v635, %v639
    %641 = vst.msk [vmem:[#allocation7] sm:$0xff] %vm629, %v640
    // Predicated region
    $region18: #{policy_forward.1} parent=1 // pred_check
      _
    $region19: #{policy_forward.1} parent=1 // pred_check_branch
      %643 = sbr.rel (0) target = $region21
    $region20: #{policy_forward.1} parent=1 // pred_region
      %s645 = ssub.s32 128, 128
      %646 = vsyncadd [#allocation4], %s645
      %s648 = sshll.u32 [#allocation7], 4
      %s649 = int_to_ptr.vmem [resolvable:$true] %s648
      %651 = dma.vmem_to_hbm [thread:$0]  %s649, 128, %s2, [#allocation4]
    $region21: #{policy_forward.1} parent=1 // pred_fallthru
      _
    // Predicated region
    $region22: #{policy_forward.1} parent=1 // pred_check
      _
    $region23: #{policy_forward.1} parent=1 // pred_check_branch
      %653 = sbr.rel (0) target = $region25
    $region24: #{policy_forward.1} parent=1 // pred_region
      %654 = dma.done [#allocation4], 128
    $region25: #{policy_forward.1} parent=1 // pred_fallthru
      _
    %655 = vsyncpa [#allocation3], 1
    %656 = vsyncpa [#allocation6], 1
    %657 = vsyncpa [#allocation4], 1

</llo_original>
